<compile_context>
chip_gen: v5e
topology: v5e:2x2
jax: 0.10.0
libtpu: 0.0.40
codegen_flags: <defaults>
</compile_context>

<pallas_src>
import functools
import math

import jax
import jax.numpy as jnp
from jax import lax
from jax.experimental import pallas as pl
from jax.experimental.pallas import tpu as pltpu

_LANES = 128
_SUBLANES = 8
_MAX_TILE_ROWS = 4096  # 4096 x 128 x 4B = 2 MiB per f32 input block


def _fscore_kernel(pr_ref, gt_ref, out_ref, *, cutoff, total, tile_rows,
                   steps_per_shard):
    s = pl.program_id(0)   # shard (parallel)
    j = pl.program_id(1)   # step within shard (arbitrary / reduction)

    @pl.when(j == 0)
    def _init():
        out_ref[...] = jnp.zeros_like(out_ref)

    # Logical (unclamped) block index; the index_map clamps the DMA to a valid
    # block, and this mask zeroes any out-of-range / padded elements.
    block_idx = s * steps_per_shard + j
    rem = total - block_idx * (tile_rows * _LANES)  # scalar int32

    r = lax.broadcasted_iota(jnp.int32, (tile_rows, _LANES), 0)
    c = lax.broadcasted_iota(jnp.int32, (tile_rows, _LANES), 1)
    valid = (r * _LANES + c) < rem

    pr = pr_ref[...].astype(jnp.float32)                       # cast in-register
    gt = jnp.where(valid, gt_ref[...].astype(jnp.float32), 0.0)
    prb = (valid & (pr > cutoff)).astype(jnp.float32)          # == (sigmoid(pr) > t)

    def _fold(x):  # (tile_rows, 128) -> (8, 128), pure vreg-wise VPU adds
        return jnp.sum(x.reshape(tile_rows // _SUBLANES, _SUBLANES, _LANES), axis=0)

    out_ref[0, 0] += _fold(prb * gt)   # tp partial
    out_ref[0, 1] += _fold(prb)        # sum(pr) partial
    out_ref[0, 2] += _fold(gt)         # sum(gt) partial


def fscore_metric(y_pr, y_gt, beta=1, eps=1e-7, threshold=0.5,
                  activation="sigmoid"):
    """Pallas TPU implementation of FscoreMetric.forward."""
    assert y_pr.shape == y_gt.shape
    assert threshold is not None  # TODO(synk): threshold=None (soft F-score) path not implemented

    # Fold the activation into the threshold: sigmoid(x) > t  <=>  x > log(t/(1-t)).
    if activation == "sigmoid":
        t = float(threshold)
        cutoff = math.log(t / (1.0 - t))
    elif activation in (None, "none"):
        cutoff = float(threshold)
    else:
        raise NotImplementedError(activation)  # TODO(synk): softmax2d activation

    total = 1
    for d in y_pr.shape:
        total *= d

    # Flatten (free) and reshape to a lane-dense (rows, 128) slab. Only pad when the
    # element count is not lane-aligned (the kernel masks the tail either way).
    pr_flat = y_pr.reshape(-1)
    gt_flat = y_gt.reshape(-1)
    rows = -(-total // _LANES)
    padded = rows * _LANES
    if padded != total:
        pr_flat = jnp.pad(pr_flat, (0, padded - total))
        gt_flat = jnp.pad(gt_flat, (0, padded - total))
    pr2d = pr_flat.reshape(rows, _LANES)
    gt2d = gt_flat.reshape(rows, _LANES)

    tile_rows = min(_MAX_TILE_ROWS, ((rows + _SUBLANES - 1) // _SUBLANES) * _SUBLANES)
    n_blocks = -(-rows // tile_rows)
    num_shards = 2 if n_blocks >= 2 else 1        # v7x: one shard per TensorCore
    steps_per_shard = -(-n_blocks // num_shards)

    def in_index(s, j):
        # Clamp so over-shot steps re-read a valid block (their contribution is
        # zeroed in-kernel by the validity mask).
        return (jnp.minimum(s * steps_per_shard + j, n_blocks - 1), 0)

    kernel = functools.partial(
        _fscore_kernel,
        cutoff=cutoff,
        total=total,
        tile_rows=tile_rows,
        steps_per_shard=steps_per_shard,
    )

    partials = pl.pallas_call(
        kernel,
        out_shape=jax.ShapeDtypeStruct((num_shards, 3, _SUBLANES, _LANES),
                                       jnp.float32),
        grid_spec=pltpu.PrefetchScalarGridSpec(
            num_scalar_prefetch=0,
            grid=(num_shards, steps_per_shard),
            in_specs=[
                pl.BlockSpec((tile_rows, _LANES), in_index),
                pl.BlockSpec((tile_rows, _LANES), in_index),
            ],
            out_specs=pl.BlockSpec((1, 3, _SUBLANES, _LANES),
                                   lambda s, j: (s, 0, 0, 0)),
        ),
        compiler_params=pltpu.CompilerParams(
            dimension_semantics=("parallel", "arbitrary")),
    )(pr2d, gt2d)

    # Tiny final reduce + scalar formula (combines the per-core partials).
    sums = jnp.sum(partials, axis=(0, 2, 3))
    tp, s_pr, s_gt = sums[0], sums[1], sums[2]
    fp = s_pr - tp
    fn = s_gt - tp
    b2 = float(beta) * float(beta)
    eps = float(eps)
    return ((1.0 + b2) * tp + eps) / ((1.0 + b2) * tp + b2 * fn + fp + eps)


def _reference_fscore(y_pr, y_gt, beta=1, eps=1e-7, threshold=0.5):
    pr = jax.nn.sigmoid(y_pr.astype(jnp.float32))
    pr = (pr > threshold).astype(jnp.float32)
    gt = y_gt.astype(jnp.float32)
    tp = jnp.sum(gt * pr)
    fp = jnp.sum(pr) - tp
    fn = jnp.sum(gt) - tp
    b2 = beta * beta
    return ((1 + b2) * tp + eps) / ((1 + b2) * tp + b2 * fn + fp + eps)


if __name__ == "__main__":
    key = jax.random.PRNGKey(0)
    k1, k2 = jax.random.split(key)
    # NCHW, consistent with PyTorch conv-output style inputs to the metric.
    y_pr = jax.random.normal(k1, (2, 4, 16, 16), dtype=jnp.float32)  # logits
    y_gt = (jax.random.uniform(k2, (2, 4, 16, 16)) > 0.5).astype(jnp.float32)

    score = fscore_metric(y_pr, y_gt, beta=1, eps=1e-7, threshold=0.5)
    score = jax.block_until_ready(score)

    ref = _reference_fscore(y_pr, y_gt)
    assert jnp.allclose(score, ref, rtol=1e-5, atol=1e-6), (score, ref)
    print("KERNEL_OK")
</pallas_src>

<mosaic_0001>
module attributes {stable_mosaic.version = 11 : i64} {
  func.func @_fscore_kernel(%arg0: i32, %arg1: i32, %arg2: memref<16x128xf32, #tpu.memory_space<vmem>>, %arg3: memref<16x128xf32, #tpu.memory_space<vmem>>, %arg4: memref<1x3x8x128xf32, #tpu.memory_space<vmem>>) attributes {dimension_semantics = [#tpu.dimension_semantics<parallel>, #tpu.dimension_semantics<arbitrary>], iteration_bounds = array<i64: 1, 1>, scalar_prefetch = 0 : i64, scratch_operands = 0 : i64, tpu.core_type = #tpu.core_type<tc>, window_params = [{transform_indices = @transform_0, window_bounds = array<i64: 16, 128>}, {transform_indices = @transform_1, window_bounds = array<i64: 16, 128>}, {transform_indices = @transform_2, window_bounds = array<i64: 1, 3, 8, 128>}]} {
    %c0_i32 = arith.constant 0 : i32
    %0 = arith.cmpi eq, %arg1, %c0_i32 : i32
    %1 = arith.extui %0 : i1 to i32
    %c0_i32_0 = arith.constant 0 : i32
    %2 = arith.cmpi ne, %1, %c0_i32_0 : i32
    scf.if %2 {
      %cst_31 = arith.constant 0.000000e+00 : f32
      %48 = vector.broadcast %cst_31 : f32 to vector<1x3x8x128xf32>
      %c0_32 = arith.constant 0 : index
      %c0_33 = arith.constant 0 : index
      %c0_34 = arith.constant 0 : index
      %c0_35 = arith.constant 0 : index
      %49 = vector.load %arg4[%c0_32, %c0_33, %c0_34, %c0_35] : memref<1x3x8x128xf32, #tpu.memory_space<vmem>>, vector<1x3x8x128xf32>
      tpu.vector_store %arg4[%c0_32, %c0_33, %c0_34, %c0_35], %48 {strides = array<i32>} : memref<1x3x8x128xf32, #tpu.memory_space<vmem>>, vector<1x3x8x128xf32>,
    } else {
    }
    %c1_i32 = arith.constant 1 : i32
    %3 = arith.muli %arg0, %c1_i32 : i32
    %4 = arith.addi %3, %arg1 : i32
    %c2048_i32 = arith.constant 2048 : i32
    %5 = arith.muli %4, %c2048_i32 : i32
    %c2048_i32_1 = arith.constant 2048 : i32
    %6 = arith.subi %c2048_i32_1, %5 : i32
    %7 = tpu.iota {dimensions = array<i32: 0>} : vector<16x128xi32>
    %8 = tpu.iota {dimensions = array<i32: 1>} : vector<16x128xi32>
    %c128_i32 = arith.constant 128 : i32
    %9 = vector.broadcast %c128_i32 : i32 to vector<16x128xi32>
    %10 = arith.muli %7, %9 : vector<16x128xi32>
    %11 = arith.addi %10, %8 : vector<16x128xi32>
    %12 = vector.broadcast %6 : i32 to vector<16x128xi32>
    %13 = arith.cmpi slt, %11, %12 : vector<16x128xi32>
    %c0 = arith.constant 0 : index
    %c0_2 = arith.constant 0 : index
    %14 = vector.load %arg2[%c0, %c0_2] : memref<16x128xf32, #tpu.memory_space<vmem>>, vector<16x128xf32>
    %c0_3 = arith.constant 0 : index
    %c0_4 = arith.constant 0 : index
    %15 = vector.load %arg3[%c0_3, %c0_4] : memref<16x128xf32, #tpu.memory_space<vmem>>, vector<16x128xf32>
    %cst = arith.constant 0.000000e+00 : f32
    %16 = vector.broadcast %cst : f32 to vector<16x128xf32>
    %17 = arith.select %13, %15, %16 : vector<16x128xi1>, vector<16x128xf32>
    %cst_5 = arith.constant 0.000000e+00 : f32
    %18 = vector.broadcast %cst_5 : f32 to vector<16x128xf32>
    %19 = arith.cmpf ogt, %14, %18 : vector<16x128xf32>
    %20 = arith.andi %13, %19 : vector<16x128xi1>
    %21 = arith.extui %20 : vector<16x128xi1> to vector<16x128xi32>
    %22 = arith.sitofp %21 : vector<16x128xi32> to vector<16x128xf32>
    %c0_6 = arith.constant 0 : index
    %c0_7 = arith.constant 0 : index
    %c0_8 = arith.constant 0 : index
    %c0_9 = arith.constant 0 : index
    %23 = vector.load %arg4[%c0_6, %c0_7, %c0_8, %c0_9] : memref<1x3x8x128xf32, #tpu.memory_space<vmem>>, vector<1x1x8x128xf32>
    %24 = vector.shape_cast %23 : vector<1x1x8x128xf32> to vector<8x128xf32>
    %25 = arith.mulf %22, %17 : vector<16x128xf32>
    %26 = vector.shape_cast %25 : vector<16x128xf32> to vector<2x8x128xf32>
    %cst_10 = arith.constant dense<0.000000e+00> : vector<8x128xf32>
    %27 = vector.multi_reduction <add>, %26, %cst_10 [0] : vector<2x8x128xf32> to vector<8x128xf32>
    %28 = arith.addf %24, %27 : vector<8x128xf32>
    %c0_11 = arith.constant 0 : index
    %c0_12 = arith.constant 0 : index
    %c0_13 = arith.constant 0 : index
    %c0_14 = arith.constant 0 : index
    %29 = vector.load %arg4[%c0_11, %c0_12, %c0_13, %c0_14] : memref<1x3x8x128xf32, #tpu.memory_space<vmem>>, vector<1x1x8x128xf32>
    %30 = vector.shape_cast %29 : vector<1x1x8x128xf32> to vector<8x128xf32>
    %31 = vector.shape_cast %28 : vector<8x128xf32> to vector<1x1x8x128xf32>
    tpu.vector_store %arg4[%c0_11, %c0_12, %c0_13, %c0_14], %31 {strides = array<i32>} : memref<1x3x8x128xf32, #tpu.memory_space<vmem>>, vector<1x1x8x128xf32>,
    %c0_15 = arith.constant 0 : index
    %c1 = arith.constant 1 : index
    %c0_16 = arith.constant 0 : index
    %c0_17 = arith.constant 0 : index
    %32 = vector.load %arg4[%c0_15, %c1, %c0_16, %c0_17] : memref<1x3x8x128xf32, #tpu.memory_space<vmem>>, vector<1x1x8x128xf32>
    %33 = vector.shape_cast %32 : vector<1x1x8x128xf32> to vector<8x128xf32>
    %34 = vector.shape_cast %22 : vector<16x128xf32> to vector<2x8x128xf32>
    %cst_18 = arith.constant dense<0.000000e+00> : vector<8x128xf32>
    %35 = vector.multi_reduction <add>, %34, %cst_18 [0] : vector<2x8x128xf32> to vector<8x128xf32>
    %36 = arith.addf %33, %35 : vector<8x128xf32>
    %c0_19 = arith.constant 0 : index
    %c1_20 = arith.constant 1 : index
    %c0_21 = arith.constant 0 : index
    %c0_22 = arith.constant 0 : index
    %37 = vector.load %arg4[%c0_19, %c1_20, %c0_21, %c0_22] : memref<1x3x8x128xf32, #tpu.memory_space<vmem>>, vector<1x1x8x128xf32>
    %38 = vector.shape_cast %37 : vector<1x1x8x128xf32> to vector<8x128xf32>
    %39 = vector.shape_cast %36 : vector<8x128xf32> to vector<1x1x8x128xf32>
    tpu.vector_store %arg4[%c0_19, %c1_20, %c0_21, %c0_22], %39 {strides = array<i32>} : memref<1x3x8x128xf32, #tpu.memory_space<vmem>>, vector<1x1x8x128xf32>,
    %c0_23 = arith.constant 0 : index
    %c2 = arith.constant 2 : index
    %c0_24 = arith.constant 0 : index
    %c0_25 = arith.constant 0 : index
    %40 = vector.load %arg4[%c0_23, %c2, %c0_24, %c0_25] : memref<1x3x8x128xf32, #tpu.memory_space<vmem>>, vector<1x1x8x128xf32>
    %41 = vector.shape_cast %40 : vector<1x1x8x128xf32> to vector<8x128xf32>
    %42 = vector.shape_cast %17 : vector<16x128xf32> to vector<2x8x128xf32>
    %cst_26 = arith.constant dense<0.000000e+00> : vector<8x128xf32>
    %43 = vector.multi_reduction <add>, %42, %cst_26 [0] : vector<2x8x128xf32> to vector<8x128xf32>
    %44 = arith.addf %41, %43 : vector<8x128xf32>
    %c0_27 = arith.constant 0 : index
    %c2_28 = arith.constant 2 : index
    %c0_29 = arith.constant 0 : index
    %c0_30 = arith.constant 0 : index
    %45 = vector.load %arg4[%c0_27, %c2_28, %c0_29, %c0_30] : memref<1x3x8x128xf32, #tpu.memory_space<vmem>>, vector<1x1x8x128xf32>
    %46 = vector.shape_cast %45 : vector<1x1x8x128xf32> to vector<8x128xf32>
    %47 = vector.shape_cast %44 : vector<8x128xf32> to vector<1x1x8x128xf32>
    tpu.vector_store %arg4[%c0_27, %c2_28, %c0_29, %c0_30], %47 {strides = array<i32>} : memref<1x3x8x128xf32, #tpu.memory_space<vmem>>, vector<1x1x8x128xf32>,
    return
  }
  func.func @transform_0(%arg0: i32, %arg1: i32) -> (i32, i32) {
    %c1_i32 = arith.constant 1 : i32
    %0 = arith.muli %arg0, %c1_i32 : i32
    %1 = arith.addi %0, %arg1 : i32
    %c0_i32 = arith.constant 0 : i32
    %2 = arith.minsi %1, %c0_i32 : i32
    %c0_i32_0 = arith.constant 0 : i32
    %c0_i32_1 = arith.constant 0 : i32
    return %2, %c0_i32_0 : i32, i32
  }
  func.func @transform_1(%arg0: i32, %arg1: i32) -> (i32, i32) {
    %c1_i32 = arith.constant 1 : i32
    %0 = arith.muli %arg0, %c1_i32 : i32
    %1 = arith.addi %0, %arg1 : i32
    %c0_i32 = arith.constant 0 : i32
    %2 = arith.minsi %1, %c0_i32 : i32
    %c0_i32_0 = arith.constant 0 : i32
    %c0_i32_1 = arith.constant 0 : i32
    return %2, %c0_i32_0 : i32, i32
  }
  func.func @transform_2(%arg0: i32, %arg1: i32) -> (i32, i32, i32, i32) {
    %c0_i32 = arith.constant 0 : i32
    %c0_i32_0 = arith.constant 0 : i32
    %c0_i32_1 = arith.constant 0 : i32
    %c0_i32_2 = arith.constant 0 : i32
    return %arg0, %c0_i32, %c0_i32_0, %c0_i32_1 : i32, i32, i32, i32
  }
}

</mosaic_0001>

<llo_original>
// kernel: tpu_custom_call.1
$region0: #{tpu_custom_call.1}
  #allocation0 [shape = 'u32[]', space=smem, size = 0x4, offset = 0x4, fixed_abs, tag = 'smem constant byte address 0x4 - core index']
  #allocation1 [shape = 'u32[72,128]{1,0:T(1,128)}', space=vmem, size = 0x9000, scoped, tag = 'internal scratch']
  %s0 = inlined_call_operand.hbm [shape: f32[16,128], index: 0, kind: input, shape index: {}]
  %s1 = inlined_call_operand.hbm [shape: f32[16,128], index: 1, kind: input, shape index: {}]
  %s2 = inlined_call_operand.hbm [shape: f32[1,3,8,128], index: 2, kind: output, shape index: {}]
  %s3 = sld [smem:[#allocation0]]
  $region30: #{tpu_custom_call.1} parent=0
    _
  %s5 = ssub.s32 1, %s3
  %s6 = scalar_select 0, %s5, %s3
  $region1: #{tpu_custom_call.1} parent=0
    #allocation2 [shape = 'u8[8192]{0}', space=vmem, size = 0x2000, scoped, tag = 'input window, operand 0, single buffered']
    #allocation3 [shape = 's32[1]{0}', space=sflag, size = 0x4, scoped, tag = 'scoped memory for tpu_custom_call.1']
    #allocation4 [shape = 's32[1]{0}', space=sflag, size = 0x4, scoped, tag = 'scoped memory for tpu_custom_call.1']
    #allocation5 [shape = 'u8[8192]{0}', space=vmem, size = 0x2000, scoped, tag = 'input window, operand 1, single buffered']
    #allocation6 [shape = 's32[1]{0}', space=sflag, size = 0x4, scoped, tag = 'scoped memory for tpu_custom_call.1']
    #allocation7 [shape = 'u8[12288]{0}', space=vmem, size = 0x3000, scoped, tag = 'output window, operand 0, single buffered']
    %7 = vsyncpa [#allocation3], 0
    %8 = vsyncpa [#allocation6], 0
    %9 = vsyncpa [#allocation4], 0
    // Predicated region
    $region2: #{tpu_custom_call.1} parent=1 // pred_check
      _
    $region3: #{tpu_custom_call.1} parent=1 // pred_check_branch
      %11 = sbr.rel (0) target = $region5
    $region4: #{tpu_custom_call.1} parent=1 // pred_region
      %s12 = sadd.s32 0, 0
      %p13 = scmp.lt.s32.totalorder %s12, 0
      %s14 = scalar_select %p13, %s12, 0
      %s15 = smul.u32 2, %s14
      %17 = vsyncadd [#allocation3], 0
      %s18 = smul.addr %s15, 8
      %s19 = scalar_lea.hbm %s0, %s18
      %s20 = sshll.u32 %s19, 4
      %s21 = int_to_ptr.hbm [resolvable:$true] %s20
      %s22 = sshll.u32 [#allocation2], 4
      %s23 = int_to_ptr.vmem [resolvable:$true] %s22
      %28 = dma.hbm_to_vmem [thread:$0]  %s21, 256, %s23, [#allocation3], 128, 128, 8
    $region5: #{tpu_custom_call.1} parent=1 // pred_fallthru
      _
    // Predicated region
    $region6: #{tpu_custom_call.1} parent=1 // pred_check
      _
    $region7: #{tpu_custom_call.1} parent=1 // pred_check_branch
      %30 = sbr.rel (0) target = $region9
    $region8: #{tpu_custom_call.1} parent=1 // pred_region
      %s31 = sadd.s32 0, 0
      %p32 = scmp.lt.s32.totalorder %s31, 0
      %s33 = scalar_select %p32, %s31, 0
      %s34 = smul.u32 2, %s33
      %36 = vsyncadd [#allocation6], 0
      %s37 = smul.addr %s34, 8
      %s38 = scalar_lea.hbm %s1, %s37
      %s39 = sshll.u32 %s38, 4
      %s40 = int_to_ptr.hbm [resolvable:$true] %s39
      %s41 = sshll.u32 [#allocation5], 4
      %s42 = int_to_ptr.vmem [resolvable:$true] %s41
      %47 = dma.hbm_to_vmem [thread:$0]  %s40, 256, %s42, [#allocation6], 128, 128, 8
    $region9: #{tpu_custom_call.1} parent=1 // pred_fallthru
      _
    // Predicated region
    $region10: #{tpu_custom_call.1} parent=1 // pred_check
      _
    $region11: #{tpu_custom_call.1} parent=1 // pred_check_branch
      %49 = sbr.rel (0) target = $region13
    $region12: #{tpu_custom_call.1} parent=1 // pred_region
      %51 = dma.done [#allocation3], 256
    $region13: #{tpu_custom_call.1} parent=1 // pred_fallthru
      _
    // Predicated region
    $region14: #{tpu_custom_call.1} parent=1 // pred_check
      _
    $region15: #{tpu_custom_call.1} parent=1 // pred_check_branch
      %53 = sbr.rel (0) target = $region17
    $region16: #{tpu_custom_call.1} parent=1 // pred_region
      %55 = dma.done [#allocation6], 256
    $region17: #{tpu_custom_call.1} parent=1 // pred_fallthru
      _
    %s56 = sadd.s32 0, 0
    %p57 = scmp.lt.s32.totalorder %s56, 0
    %s58 = scalar_select %p57, %s56, 0
    %s59 = smul.u32 2, %s58
    %s60 = sadd.s32 0, 0
    %p61 = scmp.lt.s32.totalorder %s60, 0
    %s62 = scalar_select %p61, %s60, 0
    %s63 = smul.u32 2, %s62
    %p64 = scmp.eq.s32.totalorder 0, 0
    // Predicated region
    $region18: #{tpu_custom_call.1} parent=1 // pred_check
      %p65 = pneg %p64
    $region19: #{tpu_custom_call.1} parent=1 // pred_check_branch
      %67 = sbr.rel (%p65) target = $region21
    $region20: #{tpu_custom_call.1} parent=1 // pred_region
      %68 = vst [vmem:[#allocation7] sm:$0xff] 0.0
      %69 = vst [vmem:[#allocation7 + $0x8] sm:$0xff] 0.0
      %70 = vst [vmem:[#allocation7 + $0x10] sm:$0xff] 0.0
    $region21: #{tpu_custom_call.1} parent=1 // pred_fallthru
      _
    %s71 = sadd.s32 0, 0
    %s72 = smul.u32 %s71, 2048
    %s73 = ssub.s32 2048, %s72
    %v74 = vlaneseq
    %v75 = vshrl.u32 %v74, 7
    %v76 = vadd.s32 %v75, 8
    %v77 = vlaneseq
    %v78 = vand.u32 %v77, 127
    %v79 = vmul.u32 %v75, 128
    %v80 = vmul.u32 %v76, 128
    %v81 = vadd.s32 %v79, %v78
    %v82 = vadd.s32 %v80, %v78
    %v83 = vstv %s73
    %vm84 = vcmp.lt.s32.totalorder %v81, %v83
    %vm85 = vcmp.lt.s32.totalorder %v82, %v83
    %v86 = vld [vmem:[#allocation2] sm:$0xff]
    %v87 = vld [vmem:[#allocation2 + $0x8] sm:$0xff]
    %v88 = vld [vmem:[#allocation5] sm:$0xff]
    %v89 = vld [vmem:[#allocation5 + $0x8] sm:$0xff]
    %v90 = vsel %vm84, %v88, 0.0
    %v91 = vsel %vm85, %v89, 0.0
    %vm92 = vcmp.gt.f32.partialorder %v86, 0.0
    %vm93 = vcmp.gt.f32.partialorder %v87, 0.0
    %vm94 = vmand %vm84, %vm92
    %vm95 = vmand %vm85, %vm93
    %v96 = vsel %vm94, 1, 0
    %v97 = vsel %vm95, 1, 0
    %v98 = vcvt.s32.f32 %v96
    %v99 = vcvt.s32.f32 %v97
    %v100 = vld [vmem:[#allocation7] sm:$0xff]
    %v101 = vmul.f32 %v98, %v90
    %v102 = vmul.f32 %v99, %v91
    %v103 = vadd.f32 %v101, %v102
    %v104 = vadd.f32 %v100, %v103
    %105 = vst [vmem:[#allocation7] sm:$0xff] %v104
    %s106 = scalar_lea.vmem [#allocation7], 8
    %v107 = vld [vmem:[%s106] sm:$0xff]
    %v108 = vadd.f32 %v98, %v99
    %v109 = vadd.f32 %v107, %v108
    %110 = vst [vmem:[%s106] sm:$0xff] %v109
    %s111 = scalar_lea.vmem [#allocation7], 16
    %v112 = vld [vmem:[%s111] sm:$0xff]
    %v113 = vadd.f32 %v90, %v91
    %v114 = vadd.f32 %v112, %v113
    %115 = vst [vmem:[%s111] sm:$0xff] %v114
    // Predicated region
    $region22: #{tpu_custom_call.1} parent=1 // pred_check
      _
    $region23: #{tpu_custom_call.1} parent=1 // pred_check_branch
      %117 = sbr.rel (0) target = $region25
    $region24: #{tpu_custom_call.1} parent=1 // pred_region
      %119 = vsyncadd [#allocation4], 0
      %s120 = sshll.u32 [#allocation7], 4
      %s121 = int_to_ptr.vmem [resolvable:$true] %s120
      %s122 = sshll.u32 %s2, 4
      %s123 = int_to_ptr.hbm [resolvable:$true] %s122
      %128 = dma.vmem_to_hbm [thread:$0]  %s121, 384, %s123, [#allocation4], 128, 128, 8
    $region25: #{tpu_custom_call.1} parent=1 // pred_fallthru
      _
    // Predicated region
    $region26: #{tpu_custom_call.1} parent=1 // pred_check
      _
    $region27: #{tpu_custom_call.1} parent=1 // pred_check_branch
      %130 = sbr.rel (0) target = $region29
    $region28: #{tpu_custom_call.1} parent=1 // pred_region
      %132 = dma.done [#allocation4], 384
    $region29: #{tpu_custom_call.1} parent=1 // pred_fallthru
      _
    %133 = vsyncpa [#allocation3], 1
    %134 = vsyncpa [#allocation6], 1
    %135 = vsyncpa [#allocation4], 1

</llo_original>
